<compile_context>
chip_gen: v5e
topology: v5e:2x2
jax: 0.10.0
libtpu: 0.0.40
codegen_flags: <defaults>
</compile_context>

<pallas_src>
import functools

import jax
import jax.numpy as jnp
from jax import lax
from jax.experimental import pallas as pl
from jax.experimental.pallas import tpu as pltpu


def _bottleneck_kernel(x_ref, w1_ref, s1_ref, b1_ref, w2_ref, b2_ref, o_ref,
                       stk_ref, *, H, W, M, C_in, C_out, K):
    """Fused BN1->ReLU->conv1x1->BN2->ReLU->conv3x3->concat for one sample.

    Layout: channels on sublanes, flattened (padded) H*W on lanes.
      x_ref  : (C_in, M_pad)         one NCHW sample, spatially flattened
      w1_ref : (K, C_in)      bf16   conv1 1x1 weight with BN2 scale folded in
      s1_ref : (C_in, 1)      f32    BN1 folded scale
      b1_ref : (C_in, 1)      f32    BN1 folded shift
      w2_ref : (C_out, 9*K)   bf16   conv2 3x3 weight, tap-major flattened
      b2_ref : (K, 1)         f32    BN2 folded shift
      o_ref  : (C_in + C_out, M_pad) concat([x, conv2_out], channel axis)
      stk_ref: (9*K, M_pad)   bf16   VMEM scratch: stacked conv2 operand
    """
    M_pad = x_ref.shape[-1]
    P = W + 1                                      # halo width for the 3x3 shifts

    x = x_ref[...].astype(jnp.float32)                                   # (C_in, M_pad)

    # BN1 (folded) + ReLU; bf16 MXU operand (accumulation stays f32).
    h1 = jnp.maximum(x * s1_ref[...] + b1_ref[...], 0.0).astype(jnp.bfloat16)

    # conv1 (1x1) as weight-stationary [K, C_in] @ [C_in, M]; BN2's scale is
    # already folded into w1, so only the shift + ReLU remain.
    z = jnp.dot(w1_ref[...], h1, preferred_element_type=jnp.float32)     # (K, M_pad)
    h2 = jnp.maximum(z + b2_ref[...], 0.0)

    col = lax.broadcasted_iota(jnp.int32, (1, M_pad), 1)
    if M_pad != M:
        # Spatial-pad lanes must read as zero through the 3x3 halo.
        h2 = jnp.where(col < M, h2, 0.0)
    h2 = h2.astype(jnp.bfloat16)

    # Hoisted dx = +/-1 boundary masks (never read across row ends).
    colw = col % W
    mask_l = colw != 0
    mask_r = colw != (W - 1)

    # conv2 (3x3, pad=1): build ONE stacked (9K, M_pad) operand.  Zero-pad by
    # (W+1) lanes on each side so a shift of s = dy*W + dx is a static lane
    # slice; rows falling outside [0, H) land in the zero pad.  Each tap's
    # shifted/masked window is stored straight into the VMEM scratch so only
    # one (K, M_pad) tile is live at a time.
    zpad = jnp.zeros((K, P), jnp.bfloat16)
    h2p = jnp.concatenate([zpad, h2, zpad], axis=1)                      # (K, M_pad + 2P)
    for t in range(9):
        dy, dx = t // 3 - 1, t % 3 - 1
        s = dy * W + dx
        win = h2p[:, P + s:P + s + M_pad]                                # (K, M_pad)
        if dx == 1:
            win = jnp.where(mask_r, win, jnp.bfloat16(0))
        elif dx == -1:
            win = jnp.where(mask_l, win, jnp.bfloat16(0))
        stk_ref[t * K:(t + 1) * K, :] = win.astype(stk_ref.dtype)

    # Single MXU matmul, contraction depth 9*K (instead of nine K-deep dots).
    acc = jnp.dot(w2_ref[...], stk_ref[...],
                  preferred_element_type=jnp.float32)                    # (C_out, M_pad)

    # Channel concat in registers -> one lane/sublane-dense output store.
    o_ref[...] = jnp.concatenate([x, acc], axis=0).astype(o_ref.dtype)


def bottleneck_block_forward(x, params, *, eps=1e-5, droprate=0.0):
    """Pallas forward for BottleneckBlock (eval-mode BN, dropRate == 0).

    x: [N, C_in, H, W] (NCHW).  Returns [N, C_in + C_out, H, W].
    Matmuls run with bf16 operands / f32 accumulation; HBM I/O keeps x.dtype
    (use a bf16 x if the surrounding model permits — the kernel is HBM-bound).
    """
    assert droprate == 0.0, "dropout path not implemented (module default is 0.0)"

    N, C_in, H, W = x.shape
    M = H * W
    M_pad = ((M + 127) // 128) * 128               # lane-dense I/O / stores
    w1 = params["conv1_w"]                          # [K, C_in, 1, 1]
    w2 = params["conv2_w"]                          # [C_out, K, 3, 3]
    K = w1.shape[0]                                 # inter_planes = 4 * C_out
    C_out = w2.shape[0]

    # Fold BatchNorm (eval-mode running statistics) into scale/shift.
    s1 = params["bn1_gamma"] / jnp.sqrt(params["bn1_var"] + eps)
    b1 = params["bn1_beta"] - params["bn1_mean"] * s1
    s2 = params["bn2_gamma"] / jnp.sqrt(params["bn2_var"] + eps)
    b2 = params["bn2_beta"] - params["bn2_mean"] * s2

    # Fold BN2's per-channel scale into the 1x1 conv weight; bf16 MXU operands.
    w1_folded = (w1[:, :, 0, 0] * s2[:, None]).astype(jnp.bfloat16)      # [K, C_in]
    # 3x3 weight flattened tap-major so row (t*K + k) of the stacked operand
    # pairs with tap t = (dy+1)*3 + (dx+1), channel k.
    w2_stacked = jnp.transpose(w2.reshape(C_out, K, 9), (0, 2, 1)) \
                    .reshape(C_out, 9 * K).astype(jnp.bfloat16)          # [C_out, 9K]

    # NCHW -> [N, C, H*W] is a free contiguous reshape; pad lanes to 128.
    x_flat = x.reshape(N, C_in, M)
    if M_pad != M:
        x_flat = jnp.pad(x_flat, ((0, 0), (0, 0), (0, M_pad - M)))

    kernel = functools.partial(_bottleneck_kernel,
                               H=H, W=W, M=M, C_in=C_in, C_out=C_out, K=K)

    itemsize = x.dtype.itemsize
    cost = pl.CostEstimate(
        flops=2 * N * M_pad * (C_in * K + 9 * K * C_out),
        transcendentals=0,
        bytes_accessed=(N * C_in * M_pad + N * (C_in + C_out) * M_pad) * itemsize,
    )

    out_flat = pl.pallas_call(
        kernel,
        out_shape=jax.ShapeDtypeStruct((N, C_in + C_out, M_pad), x.dtype),
        grid=(N,),
        in_specs=[
            pl.BlockSpec((None, C_in, M_pad), lambda n: (n, 0, 0)),   # x (per sample)
            pl.BlockSpec((K, C_in), lambda n: (0, 0)),                # w1 folded, bf16
            pl.BlockSpec((C_in, 1), lambda n: (0, 0)),                # bn1 scale
            pl.BlockSpec((C_in, 1), lambda n: (0, 0)),                # bn1 shift
            pl.BlockSpec((C_out, 9 * K), lambda n: (0, 0)),           # w2 stacked, bf16
            pl.BlockSpec((K, 1), lambda n: (0, 0)),                   # bn2 shift
        ],
        out_specs=pl.BlockSpec((None, C_in + C_out, M_pad), lambda n: (n, 0, 0)),
        scratch_shapes=[pltpu.VMEM((9 * K, M_pad), jnp.bfloat16)],
        compiler_params=pltpu.CompilerParams(
            dimension_semantics=("parallel",),   # batch axis shards across cores
            # v7x: 64 MiB physical / 32 MiB scoped default -> raise with headroom
            # so full-image blocks still fit at real DenseNet sizes.
            vmem_limit_bytes=48 << 20,
        ),
        cost_estimate=cost,
    )(x_flat, w1_folded,
      s1.reshape(C_in, 1).astype(jnp.float32),
      b1.reshape(C_in, 1).astype(jnp.float32),
      w2_stacked,
      b2.reshape(K, 1).astype(jnp.float32))

    out = out_flat[:, :, :M] if M_pad != M else out_flat
    return out.reshape(N, C_in + C_out, H, W)


if __name__ == "__main__":
    key = jax.random.PRNGKey(0)
    keys = jax.random.split(key, 11)

    # Small shapes consistent with the module: batch=2, input_channels=4,
    # output_channels=4 (inter_planes=16), spatial 16x16.
    N, C_in, H, W = 2, 4, 16, 16
    C_out = 4
    K = 4 * C_out

    x = jax.random.normal(keys[0], (N, C_in, H, W), dtype=jnp.float32)

    params = {
        "conv1_w": jax.random.normal(keys[1], (K, C_in, 1, 1), jnp.float32) * 0.2,
        "conv2_w": jax.random.normal(keys[2], (C_out, K, 3, 3), jnp.float32) * 0.1,
        "bn1_gamma": 1.0 + 0.1 * jax.random.normal(keys[3], (C_in,), jnp.float32),
        "bn1_beta": 0.1 * jax.random.normal(keys[4], (C_in,), jnp.float32),
        "bn1_mean": 0.1 * jax.random.normal(keys[5], (C_in,), jnp.float32),
        "bn1_var": 0.5 + jax.random.uniform(keys[6], (C_in,), jnp.float32),
        "bn2_gamma": 1.0 + 0.1 * jax.random.normal(keys[7], (K,), jnp.float32),
        "bn2_beta": 0.1 * jax.random.normal(keys[8], (K,), jnp.float32),
        "bn2_mean": 0.1 * jax.random.normal(keys[9], (K,), jnp.float32),
        "bn2_var": 0.5 + jax.random.uniform(keys[10], (K,), jnp.float32),
    }

    out = bottleneck_block_forward(x, params)
    out = jax.block_until_ready(out)
    assert out.shape == (N, C_in + C_out, H, W)

    # Pure-JAX reference (matches PyTorch BottleneckBlock.eval() forward).
    def ref_forward(x, p, eps=1e-5):
        def bn(v, g, b, m, var):
            inv = (g / jnp.sqrt(var + eps))[None, :, None, None]
            return (v - m[None, :, None, None]) * inv + b[None, :, None, None]

        h = jnp.maximum(bn(x, p["bn1_gamma"], p["bn1_beta"],
                           p["bn1_mean"], p["bn1_var"]), 0.0)
        z = jnp.einsum("nchw,kc->nkhw", h, p["conv1_w"][:, :, 0, 0])
        h2 = jnp.maximum(bn(z, p["bn2_gamma"], p["bn2_beta"],
                            p["bn2_mean"], p["bn2_var"]), 0.0)
        conv_out = lax.conv_general_dilated(
            h2, p["conv2_w"], window_strides=(1, 1), padding="SAME",
            dimension_numbers=("NCHW", "OIHW", "NCHW"))
        return jnp.concatenate([x, conv_out], axis=1)

    ref = jax.block_until_ready(ref_forward(x, params))
    max_err = float(jnp.max(jnp.abs(out - ref)))
    # Tolerance relaxed vs. the pure-f32 version: matmul operands are bf16
    # (f32 accumulation), per the performance review.
    assert jnp.allclose(out, ref, atol=5e-2, rtol=5e-2), max_err

    print("KERNEL_OK")
</pallas_src>

<mosaic_0001>
module attributes {stable_mosaic.version = 11 : i64} {
  func.func @_bottleneck_kernel(%arg0: i32, %arg1: memref<1x4x256xf32, #tpu.memory_space<vmem>>, %arg2: memref<16x4xbf16, #tpu.memory_space<vmem>>, %arg3: memref<4x1xf32, #tpu.memory_space<vmem>>, %arg4: memref<4x1xf32, #tpu.memory_space<vmem>>, %arg5: memref<4x144xbf16, #tpu.memory_space<vmem>>, %arg6: memref<16x1xf32, #tpu.memory_space<vmem>>, %arg7: memref<1x8x256xf32, #tpu.memory_space<vmem>>, %arg8: memref<144x256xbf16, #tpu.memory_space<vmem>>) attributes {dimension_semantics = [#tpu.dimension_semantics<parallel>], iteration_bounds = array<i64: 2>, scalar_prefetch = 0 : i64, scratch_operands = 1 : i64, tpu.core_type = #tpu.core_type<tc>, window_params = [{transform_indices = @transform_0, window_bounds = array<i64: 1, 4, 256>}, {pipeline_mode = #tpu.pipeline_mode<synchronous>, transform_indices = @transform_1, window_bounds = array<i64: 16, 4>}, {pipeline_mode = #tpu.pipeline_mode<synchronous>, transform_indices = @transform_2, window_bounds = array<i64: 4, 1>}, {pipeline_mode = #tpu.pipeline_mode<synchronous>, transform_indices = @transform_3, window_bounds = array<i64: 4, 1>}, {pipeline_mode = #tpu.pipeline_mode<synchronous>, transform_indices = @transform_4, window_bounds = array<i64: 4, 144>}, {pipeline_mode = #tpu.pipeline_mode<synchronous>, transform_indices = @transform_5, window_bounds = array<i64: 16, 1>}, {transform_indices = @transform_6, window_bounds = array<i64: 1, 8, 256>}]} {
    %c0 = arith.constant 0 : index
    %c0_0 = arith.constant 0 : index
    %c0_1 = arith.constant 0 : index
    %0 = vector.load %arg1[%c0, %c0_0, %c0_1] : memref<1x4x256xf32, #tpu.memory_space<vmem>>, vector<1x4x256xf32>
    %1 = vector.shape_cast %0 : vector<1x4x256xf32> to vector<4x256xf32>
    %c0_2 = arith.constant 0 : index
    %c0_3 = arith.constant 0 : index
    %2 = vector.load %arg3[%c0_2, %c0_3] : memref<4x1xf32, #tpu.memory_space<vmem>>, vector<4x1xf32>
    %3 = vector.broadcast %2 : vector<4x1xf32> to vector<4x256xf32>
    %4 = arith.mulf %1, %3 : vector<4x256xf32>
    %c0_4 = arith.constant 0 : index
    %c0_5 = arith.constant 0 : index
    %5 = vector.load %arg4[%c0_4, %c0_5] : memref<4x1xf32, #tpu.memory_space<vmem>>, vector<4x1xf32>
    %6 = vector.broadcast %5 : vector<4x1xf32> to vector<4x256xf32>
    %7 = arith.addf %4, %6 : vector<4x256xf32>
    %cst = arith.constant 0.000000e+00 : f32
    %8 = vector.broadcast %cst : f32 to vector<4x256xf32>
    %9 = arith.maximumf %7, %8 : vector<4x256xf32>
    %10 = arith.truncf %9 : vector<4x256xf32> to vector<4x256xbf16>
    %c0_6 = arith.constant 0 : index
    %c0_7 = arith.constant 0 : index
    %11 = vector.load %arg2[%c0_6, %c0_7] : memref<16x4xbf16, #tpu.memory_space<vmem>>, vector<16x4xbf16>
    %cst_8 = arith.constant dense<0.000000e+00> : vector<16x256xf32>
    %12 = tpu.matmul %11, %10, %cst_8 {dimension_numbers = #tpu.dot_dimension_numbers<[1], [0], [0], [1], [0, 0, 1, 1], [], []>} : vector<16x4xbf16>, vector<4x256xbf16>, vector<16x256xf32> -> vector<16x256xf32>
    %c0_9 = arith.constant 0 : index
    %c0_10 = arith.constant 0 : index
    %13 = vector.load %arg6[%c0_9, %c0_10] : memref<16x1xf32, #tpu.memory_space<vmem>>, vector<16x1xf32>
    %14 = vector.broadcast %13 : vector<16x1xf32> to vector<16x256xf32>
    %15 = arith.addf %12, %14 : vector<16x256xf32>
    %cst_11 = arith.constant 0.000000e+00 : f32
    %16 = vector.broadcast %cst_11 : f32 to vector<16x256xf32>
    %17 = arith.maximumf %15, %16 : vector<16x256xf32>
    %18 = tpu.iota {dimensions = array<i32: 1>} : vector<1x256xi32>
    %19 = arith.truncf %17 : vector<16x256xf32> to vector<16x256xbf16>
    %c16_i32 = arith.constant 16 : i32
    %c0_i32 = arith.constant 0 : i32
    %20 = arith.cmpi eq, %c16_i32, %c0_i32 : i32
    %c1_i32 = arith.constant 1 : i32
    %21 = arith.select %20, %c1_i32, %c16_i32 : i32
    %22 = vector.broadcast %21 : i32 to vector<1x256xi32>
    %23 = arith.remsi %18, %22 : vector<1x256xi32>
    %c0_i32_12 = arith.constant 0 : i32
    %24 = vector.broadcast %c0_i32_12 : i32 to vector<1x256xi32>
    %25 = arith.cmpi ne, %23, %24 : vector<1x256xi32>
    %c0_i32_13 = arith.constant 0 : i32
    %26 = vector.broadcast %c0_i32_13 : i32 to vector<1x256xi32>
    %27 = arith.cmpi slt, %23, %26 : vector<1x256xi32>
    %c0_i32_14 = arith.constant 0 : i32
    %28 = arith.cmpi slt, %21, %c0_i32_14 : i32
    %29 = vector.broadcast %28 : i1 to vector<1x256xi1>
    %30 = vector.broadcast %29 : vector<1x256xi1> to vector<1x256xi1>
    %31 = arith.xori %27, %30 : vector<1x256xi1>
    %32 = arith.andi %31, %25 : vector<1x256xi1>
    %33 = vector.broadcast %21 : i32 to vector<1x256xi32>
    %34 = arith.addi %23, %33 : vector<1x256xi32>
    %35 = arith.select %32, %34, %23 : vector<1x256xi1>, vector<1x256xi32>
    %c0_i32_15 = arith.constant 0 : i32
    %36 = vector.broadcast %c0_i32_15 : i32 to vector<1x256xi32>
    %37 = arith.cmpi ne, %35, %36 : vector<1x256xi32>
    %c15_i32 = arith.constant 15 : i32
    %38 = vector.broadcast %c15_i32 : i32 to vector<1x256xi32>
    %39 = arith.cmpi ne, %35, %38 : vector<1x256xi32>
    %cst_16 = arith.constant 0.000000e+00 : bf16
    %40 = vector.broadcast %cst_16 : bf16 to vector<16x17xbf16>
    %41 = tpu.concatenate %40, %19, %40 in 1 : vector<16x17xbf16>, vector<16x256xbf16>, vector<16x17xbf16> -> vector<16x290xbf16>
    %42 = vector.extract_strided_slice %41 {offsets = [0, 0], sizes = [16, 256], strides = [1, 1]} : vector<16x290xbf16> to vector<16x256xbf16>
    %cst_17 = arith.constant 0.000000e+00 : bf16
    %43 = vector.shape_cast %37 : vector<1x256xi1> to vector<1x256xi1>
    %44 = vector.broadcast %43 : vector<1x256xi1> to vector<16x256xi1>
    %45 = vector.broadcast %cst_17 : bf16 to vector<16x256xbf16>
    %46 = arith.select %44, %42, %45 : vector<16x256xi1>, vector<16x256xbf16>
    %c0_18 = arith.constant 0 : index
    %c0_19 = arith.constant 0 : index
    %47 = vector.load %arg8[%c0_18, %c0_19] : memref<144x256xbf16, #tpu.memory_space<vmem>>, vector<16x256xbf16>
    tpu.vector_store %arg8[%c0_18, %c0_19], %46 {strides = array<i32>} : memref<144x256xbf16, #tpu.memory_space<vmem>>, vector<16x256xbf16>,
    %48 = vector.extract_strided_slice %41 {offsets = [0, 1], sizes = [16, 256], strides = [1, 1]} : vector<16x290xbf16> to vector<16x256xbf16>
    %c16 = arith.constant 16 : index
    %c0_20 = arith.constant 0 : index
    %49 = vector.load %arg8[%c16, %c0_20] : memref<144x256xbf16, #tpu.memory_space<vmem>>, vector<16x256xbf16>
    tpu.vector_store %arg8[%c16, %c0_20], %48 {strides = array<i32>} : memref<144x256xbf16, #tpu.memory_space<vmem>>, vector<16x256xbf16>,
    %50 = vector.extract_strided_slice %41 {offsets = [0, 2], sizes = [16, 256], strides = [1, 1]} : vector<16x290xbf16> to vector<16x256xbf16>
    %cst_21 = arith.constant 0.000000e+00 : bf16
    %51 = vector.shape_cast %39 : vector<1x256xi1> to vector<1x256xi1>
    %52 = vector.broadcast %51 : vector<1x256xi1> to vector<16x256xi1>
    %53 = vector.broadcast %cst_21 : bf16 to vector<16x256xbf16>
    %54 = arith.select %52, %50, %53 : vector<16x256xi1>, vector<16x256xbf16>
    %c32 = arith.constant 32 : index
    %c0_22 = arith.constant 0 : index
    %55 = vector.load %arg8[%c32, %c0_22] : memref<144x256xbf16, #tpu.memory_space<vmem>>, vector<16x256xbf16>
    tpu.vector_store %arg8[%c32, %c0_22], %54 {strides = array<i32>} : memref<144x256xbf16, #tpu.memory_space<vmem>>, vector<16x256xbf16>,
    %56 = vector.extract_strided_slice %41 {offsets = [0, 16], sizes = [16, 256], strides = [1, 1]} : vector<16x290xbf16> to vector<16x256xbf16>
    %cst_23 = arith.constant 0.000000e+00 : bf16
    %57 = vector.shape_cast %37 : vector<1x256xi1> to vector<1x256xi1>
    %58 = vector.broadcast %57 : vector<1x256xi1> to vector<16x256xi1>
    %59 = vector.broadcast %cst_23 : bf16 to vector<16x256xbf16>
    %60 = arith.select %58, %56, %59 : vector<16x256xi1>, vector<16x256xbf16>
    %c48 = arith.constant 48 : index
    %c0_24 = arith.constant 0 : index
    %61 = vector.load %arg8[%c48, %c0_24] : memref<144x256xbf16, #tpu.memory_space<vmem>>, vector<16x256xbf16>
    tpu.vector_store %arg8[%c48, %c0_24], %60 {strides = array<i32>} : memref<144x256xbf16, #tpu.memory_space<vmem>>, vector<16x256xbf16>,
    %62 = vector.extract_strided_slice %41 {offsets = [0, 17], sizes = [16, 256], strides = [1, 1]} : vector<16x290xbf16> to vector<16x256xbf16>
    %c64 = arith.constant 64 : index
    %c0_25 = arith.constant 0 : index
    %63 = vector.load %arg8[%c64, %c0_25] : memref<144x256xbf16, #tpu.memory_space<vmem>>, vector<16x256xbf16>
    tpu.vector_store %arg8[%c64, %c0_25], %62 {strides = array<i32>} : memref<144x256xbf16, #tpu.memory_space<vmem>>, vector<16x256xbf16>,
    %64 = vector.extract_strided_slice %41 {offsets = [0, 18], sizes = [16, 256], strides = [1, 1]} : vector<16x290xbf16> to vector<16x256xbf16>
    %cst_26 = arith.constant 0.000000e+00 : bf16
    %65 = vector.shape_cast %39 : vector<1x256xi1> to vector<1x256xi1>
    %66 = vector.broadcast %65 : vector<1x256xi1> to vector<16x256xi1>
    %67 = vector.broadcast %cst_26 : bf16 to vector<16x256xbf16>
    %68 = arith.select %66, %64, %67 : vector<16x256xi1>, vector<16x256xbf16>
    %c80 = arith.constant 80 : index
    %c0_27 = arith.constant 0 : index
    %69 = vector.load %arg8[%c80, %c0_27] : memref<144x256xbf16, #tpu.memory_space<vmem>>, vector<16x256xbf16>
    tpu.vector_store %arg8[%c80, %c0_27], %68 {strides = array<i32>} : memref<144x256xbf16, #tpu.memory_space<vmem>>, vector<16x256xbf16>,
    %70 = vector.extract_strided_slice %41 {offsets = [0, 32], sizes = [16, 256], strides = [1, 1]} : vector<16x290xbf16> to vector<16x256xbf16>
    %cst_28 = arith.constant 0.000000e+00 : bf16
    %71 = vector.shape_cast %37 : vector<1x256xi1> to vector<1x256xi1>
    %72 = vector.broadcast %71 : vector<1x256xi1> to vector<16x256xi1>
    %73 = vector.broadcast %cst_28 : bf16 to vector<16x256xbf16>
    %74 = arith.select %72, %70, %73 : vector<16x256xi1>, vector<16x256xbf16>
    %c96 = arith.constant 96 : index
    %c0_29 = arith.constant 0 : index
    %75 = vector.load %arg8[%c96, %c0_29] : memref<144x256xbf16, #tpu.memory_space<vmem>>, vector<16x256xbf16>
    tpu.vector_store %arg8[%c96, %c0_29], %74 {strides = array<i32>} : memref<144x256xbf16, #tpu.memory_space<vmem>>, vector<16x256xbf16>,
    %76 = vector.extract_strided_slice %41 {offsets = [0, 33], sizes = [16, 256], strides = [1, 1]} : vector<16x290xbf16> to vector<16x256xbf16>
    %c112 = arith.constant 112 : index
    %c0_30 = arith.constant 0 : index
    %77 = vector.load %arg8[%c112, %c0_30] : memref<144x256xbf16, #tpu.memory_space<vmem>>, vector<16x256xbf16>
    tpu.vector_store %arg8[%c112, %c0_30], %76 {strides = array<i32>} : memref<144x256xbf16, #tpu.memory_space<vmem>>, vector<16x256xbf16>,
    %78 = vector.extract_strided_slice %41 {offsets = [0, 34], sizes = [16, 256], strides = [1, 1]} : vector<16x290xbf16> to vector<16x256xbf16>
    %cst_31 = arith.constant 0.000000e+00 : bf16
    %79 = vector.shape_cast %39 : vector<1x256xi1> to vector<1x256xi1>
    %80 = vector.broadcast %79 : vector<1x256xi1> to vector<16x256xi1>
    %81 = vector.broadcast %cst_31 : bf16 to vector<16x256xbf16>
    %82 = arith.select %80, %78, %81 : vector<16x256xi1>, vector<16x256xbf16>
    %c128 = arith.constant 128 : index
    %c0_32 = arith.constant 0 : index
    %83 = vector.load %arg8[%c128, %c0_32] : memref<144x256xbf16, #tpu.memory_space<vmem>>, vector<16x256xbf16>
    tpu.vector_store %arg8[%c128, %c0_32], %82 {strides = array<i32>} : memref<144x256xbf16, #tpu.memory_space<vmem>>, vector<16x256xbf16>,
    %c0_33 = arith.constant 0 : index
    %c0_34 = arith.constant 0 : index
    %84 = vector.load %arg5[%c0_33, %c0_34] : memref<4x144xbf16, #tpu.memory_space<vmem>>, vector<4x144xbf16>
    %c0_35 = arith.constant 0 : index
    %c0_36 = arith.constant 0 : index
    %85 = vector.load %arg8[%c0_35, %c0_36] : memref<144x256xbf16, #tpu.memory_space<vmem>>, vector<144x256xbf16>
    %cst_37 = arith.constant dense<0.000000e+00> : vector<4x256xf32>
    %86 = tpu.matmul %84, %85, %cst_37 {dimension_numbers = #tpu.dot_dimension_numbers<[1], [0], [0], [1], [0, 0, 1, 1], [], []>} : vector<4x144xbf16>, vector<144x256xbf16>, vector<4x256xf32> -> vector<4x256xf32>
    %87 = tpu.concatenate %1, %86 in 0 : vector<4x256xf32>, vector<4x256xf32> -> vector<8x256xf32>
    %c0_38 = arith.constant 0 : index
    %c0_39 = arith.constant 0 : index
    %c0_40 = arith.constant 0 : index
    %88 = vector.load %arg7[%c0_38, %c0_39, %c0_40] : memref<1x8x256xf32, #tpu.memory_space<vmem>>, vector<1x8x256xf32>
    %89 = vector.shape_cast %88 : vector<1x8x256xf32> to vector<8x256xf32>
    %90 = vector.shape_cast %87 : vector<8x256xf32> to vector<1x8x256xf32>
    tpu.vector_store %arg7[%c0_38, %c0_39, %c0_40], %90 {strides = array<i32>} : memref<1x8x256xf32, #tpu.memory_space<vmem>>, vector<1x8x256xf32>,
    return
  }
  func.func @transform_0(%arg0: i32) -> (i32, i32, i32) {
    %c0_i32 = arith.constant 0 : i32
    %c0_i32_0 = arith.constant 0 : i32
    %c0_i32_1 = arith.constant 0 : i32
    return %arg0, %c0_i32, %c0_i32_0 : i32, i32, i32
  }
  func.func @transform_1(%arg0: i32) -> (i32, i32) {
    %c0_i32 = arith.constant 0 : i32
    %c0_i32_0 = arith.constant 0 : i32
    %c0_i32_1 = arith.constant 0 : i32
    return %c0_i32, %c0_i32_0 : i32, i32
  }
  func.func @transform_2(%arg0: i32) -> (i32, i32) {
    %c0_i32 = arith.constant 0 : i32
    %c0_i32_0 = arith.constant 0 : i32
    %c0_i32_1 = arith.constant 0 : i32
    return %c0_i32, %c0_i32_0 : i32, i32
  }
  func.func @transform_3(%arg0: i32) -> (i32, i32) {
    %c0_i32 = arith.constant 0 : i32
    %c0_i32_0 = arith.constant 0 : i32
    %c0_i32_1 = arith.constant 0 : i32
    return %c0_i32, %c0_i32_0 : i32, i32
  }
  func.func @transform_4(%arg0: i32) -> (i32, i32) {
    %c0_i32 = arith.constant 0 : i32
    %c0_i32_0 = arith.constant 0 : i32
    %c0_i32_1 = arith.constant 0 : i32
    return %c0_i32, %c0_i32_0 : i32, i32
  }
  func.func @transform_5(%arg0: i32) -> (i32, i32) {
    %c0_i32 = arith.constant 0 : i32
    %c0_i32_0 = arith.constant 0 : i32
    %c0_i32_1 = arith.constant 0 : i32
    return %c0_i32, %c0_i32_0 : i32, i32
  }
  func.func @transform_6(%arg0: i32) -> (i32, i32, i32) {
    %c0_i32 = arith.constant 0 : i32
    %c0_i32_0 = arith.constant 0 : i32
    %c0_i32_1 = arith.constant 0 : i32
    return %arg0, %c0_i32, %c0_i32_0 : i32, i32, i32
  }
}

</mosaic_0001>

<llo_original>
// kernel: tpu_custom_call.1
$region0: #{tpu_custom_call.1}
  #allocation0 [shape = 'u32[]', space=smem, size = 0x4, offset = 0x4, fixed_abs, tag = 'smem constant byte address 0x4 - core index']
  #allocation1 [shape = 'u32[72,128]{1,0:T(1,128)}', space=vmem, size = 0x9000, scoped, tag = 'internal scratch']
  #allocation2 [shape = 'bf16[144,256]{1,0:T(8,128)(2,1)}', space=vmem, size = 0x12000, scoped, tag = 'scratch operand']
  %s0 = inlined_call_operand.vmem [shape: f32[2,4,256], index: 0, kind: input, shape index: {}]
  %s1 = inlined_call_operand.vmem [shape: bf16[16,4], index: 1, kind: input, shape index: {}]
  %s2 = inlined_call_operand.vmem [shape: f32[4,1], index: 2, kind: input, shape index: {}]
  %s3 = inlined_call_operand.vmem [shape: f32[4,1], index: 3, kind: input, shape index: {}]
  %s4 = inlined_call_operand.vmem [shape: bf16[4,144], index: 4, kind: input, shape index: {}]
  %s5 = inlined_call_operand.vmem [shape: f32[16,1], index: 5, kind: input, shape index: {}]
  %s6 = inlined_call_operand.hbm [shape: f32[2,8,256], index: 6, kind: output, shape index: {}]
  %s7 = sld [smem:[#allocation0]]
  $region57: #{tpu_custom_call.1} parent=0
    _
  %s9 = ssub.s32 1, %s7
  %s10 = scalar_select 0, %s9, %s7
  $region1: #{tpu_custom_call.1} parent=0
    #allocation3 [shape = 'u8[16384]{0}', space=vmem, size = 0x4000, scoped, tag = 'output window, operand 0']
    #allocation4 [shape = 's32[2]{0}', space=sflag, size = 0x8, scoped, tag = 'scoped memory for tpu_custom_call.1']
    %11 = vsyncpa [#allocation4], 0
    %s12 = scalar_lea.sflag [#allocation4], 1
    %13 = vsyncpa %s12, 0
    loop: start=0, step=1, limit=4
    $region2: #{tpu_custom_call.1} parent=1 // loop_pre_header
      _
    $region3: #{tpu_custom_call.1} parent=1 // loop_header
      %s15 = sphi 0, %s19
      %p16 = scmp.ge.s32.totalorder %s15, 4
      %s25 = sphi 0, %s27
      %s28 = sphi 0, %s25
      %s29 = sphi 0, %s28
      %s45 = sphi 0, %s29
      %s49 = sphi 0, %s49
      %s51 = sphi 0, %s49
      %s52 = sphi 0, %s51
      %s66 = sphi 0, %s52
      %s70 = sphi 0, %s70
      %s72 = sphi 0, %s70
      %s73 = sphi 0, %s72
      %s87 = sphi 0, %s73
      %s91 = sphi 0, %s91
      %s93 = sphi 0, %s91
      %s94 = sphi 0, %s93
      %s108 = sphi 0, %s94
      %s112 = sphi 0, %s112
      %s114 = sphi 0, %s112
      %s115 = sphi 0, %s114
      %s129 = sphi 0, %s115
      %s133 = sphi 0, %s133
      %s135 = sphi 0, %s133
      %s136 = sphi 0, %s135
      %s150 = sphi 0, %s136
      %s156 = sphi 0, %s158
      %s159 = sphi 0, %s156
      %s160 = sphi 0, %s159
      %s176 = sphi 0, %s160
    $region4: #{tpu_custom_call.1} parent=1 // loop_header_branch
      %18 = sbr.rel (%p16) target = $region8
    $region5: #{tpu_custom_call.1} parent=1 // loop_body
      %s20 = ssub.s32 %s15, 1
      %s21 = ssub.s32 %s15, 2
      %s22 = sadd.s32 %s15, 1
      %s23 = ssub.s32 %s15, %s22
      %p24 = scmp.eq.s32.totalorder %s23, 0
      %s26 = sadd.s32 %s25, 1
      %s27 = scalar_select %p24, %s25, %s26
      %p30 = pneg %p24
      %p31 = scmp.eq.s32.totalorder %s15, 1
      %p32 = por %p30, %p31
      %p33 = scmp.ne.s32.totalorder %s25, %s28
      %p34 = scmp.eq.s32.totalorder %s15, 0
      %p35 = por %p33, %p34
      %p36 = scmp.ne.s32.totalorder %s25, %s28
      %p37 = scmp.eq.s32.totalorder %s20, 1
      %p38 = por %p36, %p37
      %p39 = scmp.ne.s32.totalorder %s28, %s29
      %p40 = scmp.eq.s32.totalorder %s20, 0
      %p41 = por %p39, %p40
      %p42 = scmp.ne.s32.totalorder %s28, %s29
      %p43 = scmp.eq.s32.totalorder %s21, 1
      %p44 = por %p42, %p43
      %p46 = scmp.ne.s32.totalorder %s29, %s45
      %p47 = scmp.eq.s32.totalorder %s21, 0
      %p48 = por %p46, %p47
      %s50 = sadd.s32 %s49, 1
      %p53 = scmp.eq.s32.totalorder %s15, 1
      %p54 = scmp.ne.s32.totalorder %s49, %s51
      %p55 = scmp.eq.s32.totalorder %s15, 0
      %p56 = por %p54, %p55
      %p57 = scmp.ne.s32.totalorder %s49, %s51
      %p58 = scmp.eq.s32.totalorder %s20, 1
      %p59 = por %p57, %p58
      %p60 = scmp.ne.s32.totalorder %s51, %s52
      %p61 = scmp.eq.s32.totalorder %s20, 0
      %p62 = por %p60, %p61
      %p63 = scmp.ne.s32.totalorder %s51, %s52
      %p64 = scmp.eq.s32.totalorder %s21, 1
      %p65 = por %p63, %p64
      %p67 = scmp.ne.s32.totalorder %s52, %s66
      %p68 = scmp.eq.s32.totalorder %s21, 0
      %p69 = por %p67, %p68
      %s71 = sadd.s32 %s70, 1
      %p74 = scmp.eq.s32.totalorder %s15, 1
      %p75 = scmp.ne.s32.totalorder %s70, %s72
      %p76 = scmp.eq.s32.totalorder %s15, 0
      %p77 = por %p75, %p76
      %p78 = scmp.ne.s32.totalorder %s70, %s72
      %p79 = scmp.eq.s32.totalorder %s20, 1
      %p80 = por %p78, %p79
      %p81 = scmp.ne.s32.totalorder %s72, %s73
      %p82 = scmp.eq.s32.totalorder %s20, 0
      %p83 = por %p81, %p82
      %p84 = scmp.ne.s32.totalorder %s72, %s73
      %p85 = scmp.eq.s32.totalorder %s21, 1
      %p86 = por %p84, %p85
      %p88 = scmp.ne.s32.totalorder %s73, %s87
      %p89 = scmp.eq.s32.totalorder %s21, 0
      %p90 = por %p88, %p89
      %s92 = sadd.s32 %s91, 1
      %p95 = scmp.eq.s32.totalorder %s15, 1
      %p96 = scmp.ne.s32.totalorder %s91, %s93
      %p97 = scmp.eq.s32.totalorder %s15, 0
      %p98 = por %p96, %p97
      %p99 = scmp.ne.s32.totalorder %s91, %s93
      %p100 = scmp.eq.s32.totalorder %s20, 1
      %p101 = por %p99, %p100
      %p102 = scmp.ne.s32.totalorder %s93, %s94
      %p103 = scmp.eq.s32.totalorder %s20, 0
      %p104 = por %p102, %p103
      %p105 = scmp.ne.s32.totalorder %s93, %s94
      %p106 = scmp.eq.s32.totalorder %s21, 1
      %p107 = por %p105, %p106
      %p109 = scmp.ne.s32.totalorder %s94, %s108
      %p110 = scmp.eq.s32.totalorder %s21, 0
      %p111 = por %p109, %p110
      %s113 = sadd.s32 %s112, 1
      %p116 = scmp.eq.s32.totalorder %s15, 1
      %p117 = scmp.ne.s32.totalorder %s112, %s114
      %p118 = scmp.eq.s32.totalorder %s15, 0
      %p119 = por %p117, %p118
      %p120 = scmp.ne.s32.totalorder %s112, %s114
      %p121 = scmp.eq.s32.totalorder %s20, 1
      %p122 = por %p120, %p121
      %p123 = scmp.ne.s32.totalorder %s114, %s115
      %p124 = scmp.eq.s32.totalorder %s20, 0
      %p125 = por %p123, %p124
      %p126 = scmp.ne.s32.totalorder %s114, %s115
      %p127 = scmp.eq.s32.totalorder %s21, 1
      %p128 = por %p126, %p127
      %p130 = scmp.ne.s32.totalorder %s115, %s129
      %p131 = scmp.eq.s32.totalorder %s21, 0
      %p132 = por %p130, %p131
      %s134 = sadd.s32 %s133, 1
      %p137 = scmp.eq.s32.totalorder %s15, 1
      %p138 = scmp.ne.s32.totalorder %s133, %s135
      %p139 = scmp.eq.s32.totalorder %s15, 0
      %p140 = por %p138, %p139
      %p141 = scmp.ne.s32.totalorder %s133, %s135
      %p142 = scmp.eq.s32.totalorder %s20, 1
      %p143 = por %p141, %p142
      %p144 = scmp.ne.s32.totalorder %s135, %s136
      %p145 = scmp.eq.s32.totalorder %s20, 0
      %p146 = por %p144, %p145
      %p147 = scmp.ne.s32.totalorder %s135, %s136
      %p148 = scmp.eq.s32.totalorder %s21, 1
      %p149 = por %p147, %p148
      %p151 = scmp.ne.s32.totalorder %s136, %s150
      %p152 = scmp.eq.s32.totalorder %s21, 0
      %p153 = por %p151, %p152
      %s154 = ssub.s32 %s15, %s22
      %p155 = scmp.eq.s32.totalorder %s154, 0
      %s157 = sadd.s32 %s156, 1
      %s158 = scalar_select %p155, %s156, %s157
      %p161 = pneg %p155
      %p162 = scmp.eq.s32.totalorder %s15, 1
      %p163 = por %p161, %p162
      %p164 = scmp.ne.s32.totalorder %s156, %s159
      %p165 = scmp.eq.s32.totalorder %s15, 0
      %p166 = por %p164, %p165
      %p167 = scmp.ne.s32.totalorder %s156, %s159
      %p168 = scmp.eq.s32.totalorder %s20, 1
      %p169 = por %p167, %p168
      %p170 = scmp.ne.s32.totalorder %s159, %s160
      %p171 = scmp.eq.s32.totalorder %s20, 0
      %p172 = por %p170, %p171
      %p173 = scmp.ne.s32.totalorder %s159, %s160
      %p174 = scmp.eq.s32.totalorder %s21, 1
      %p175 = por %p173, %p174
      %p177 = scmp.ne.s32.totalorder %s160, %s176
      %p178 = scmp.eq.s32.totalorder %s21, 0
      %p179 = por %p177, %p178
      %p180 = scmp.le.s32.totalorder 1, %s15
      %p181 = scmp.lt.s32.totalorder %s15, 3
      %p182 = pnand %p180, %p181
      %p183 = pneg %p182
      // Predicated region
      $region9: #{tpu_custom_call.1} parent=5 // pred_check
        _
      $region10: #{tpu_custom_call.1} parent=5 // pred_check_branch
        %185 = sbr.rel (%p182) target = $region12
      $region11: #{tpu_custom_call.1} parent=5 // pred_region
        %s186 = ssub.s32 %s15, 1
        // Predicated region
        $region13: #{tpu_custom_call.1} parent=11 // pred_check
          %p187 = pneg %p62
        $region14: #{tpu_custom_call.1} parent=11 // pred_check_branch
          %189 = sbr.rel (%p187) target = $region16
        $region15: #{tpu_custom_call.1} parent=11 // pred_region
          _
        $region16: #{tpu_custom_call.1} parent=11 // pred_fallthru
          _
        // Predicated region
        $region17: #{tpu_custom_call.1} parent=11 // pred_check
          %p190 = pneg %p83
        $region18: #{tpu_custom_call.1} parent=11 // pred_check_branch
          %192 = sbr.rel (%p190) target = $region20
        $region19: #{tpu_custom_call.1} parent=11 // pred_region
          _
        $region20: #{tpu_custom_call.1} parent=11 // pred_fallthru
          _
        // Predicated region
        $region21: #{tpu_custom_call.1} parent=11 // pred_check
          %p193 = pneg %p104
        $region22: #{tpu_custom_call.1} parent=11 // pred_check_branch
          %195 = sbr.rel (%p193) target = $region24
        $region23: #{tpu_custom_call.1} parent=11 // pred_region
          _
        $region24: #{tpu_custom_call.1} parent=11 // pred_fallthru
          _
        // Predicated region
        $region25: #{tpu_custom_call.1} parent=11 // pred_check
          %p196 = pneg %p125
        $region26: #{tpu_custom_call.1} parent=11 // pred_check_branch
          %198 = sbr.rel (%p196) target = $region28
        $region27: #{tpu_custom_call.1} parent=11 // pred_region
          _
        $region28: #{tpu_custom_call.1} parent=11 // pred_fallthru
          _
        // Predicated region
        $region29: #{tpu_custom_call.1} parent=11 // pred_check
          %p199 = pneg %p146
        $region30: #{tpu_custom_call.1} parent=11 // pred_check_branch
          %201 = sbr.rel (%p199) target = $region32
        $region31: #{tpu_custom_call.1} parent=11 // pred_region
          _
        $region32: #{tpu_custom_call.1} parent=11 // pred_fallthru
          _
      $region12: #{tpu_custom_call.1} parent=5 // pred_fallthru
        _
      %p202 = scmp.lt.s32.totalorder %s15, 2
      // Predicated region
      $region33: #{tpu_custom_call.1} parent=5 // pred_check
        %p203 = pneg %p202
      $region34: #{tpu_custom_call.1} parent=5 // pred_check_branch
        %205 = sbr.rel (%p203) target = $region36
      $region35: #{tpu_custom_call.1} parent=5 // pred_region
        // Predicated region
        $region37: #{tpu_custom_call.1} parent=35 // pred_check
          %p206 = pneg %p35
        $region38: #{tpu_custom_call.1} parent=35 // pred_check_branch
          %208 = sbr.rel (%p206) target = $region40
        $region39: #{tpu_custom_call.1} parent=35 // pred_region
          %p209 = scmp.lt.s32.totalorder %s15, 1
          %s210 = scalar_select %p209, %s15, 1
          %s211 = smul.addr %s210, 2
          %s212 = smul.addr %s211, 4
          %s213 = scalar_lea.vmem %s0, %s212
        $region40: #{tpu_custom_call.1} parent=35 // pred_fallthru
          _
      $region36: #{tpu_custom_call.1} parent=5 // pred_fallthru
        _
      %p214 = scmp.le.s32.totalorder 1, %s15
      %p215 = scmp.lt.s32.totalorder %s15, 3
      %p216 = pnand %p214, %p215
      %p217 = pneg %p216
      // Predicated region
      $region41: #{tpu_custom_call.1} parent=5 // pred_check
        _
      $region42: #{tpu_custom_call.1} parent=5 // pred_check_branch
        %219 = sbr.rel (%p216) target = $region44
      $region43: #{tpu_custom_call.1} parent=5 // pred_region
        %s220 = ssub.s32 %s15, 1
        %p221 = scmp.lt.s32.totalorder %s20, 1
        %s222 = scalar_select %p221, %s20, 1
        %s223 = smul.addr %s222, 2
        %s224 = smul.addr %s223, 4
        %s225 = scalar_lea.vmem %s0, %s224
        %p226 = pneg %p41
        %p227 = pneg %p38
        %p228 = pneg %p62
        %p229 = pneg %p59
        %p230 = pneg %p83
        %p231 = pneg %p80
        %p232 = pneg %p104
        %p233 = pneg %p101
        %p234 = pneg %p125
        %p235 = pneg %p122
        %p236 = pneg %p146
        %p237 = pneg %p143
        %p238 = pneg %p172
        %p239 = pneg %p169
        %s240 = sand.u32 %s159, 1
        %s241 = scalar_lea.sflag [#allocation4], %s240
        %s242 = sand.u32 %s159, 1
        %s243 = smul.addr %s242, 16
        %s244 = scalar_lea.vmem [#allocation3], %s243
        %p245 = scmp.lt.s32.totalorder %s20, 1
        %s246 = scalar_select %p245, %s20, 1
        %s247 = smul.addr %s246, 2
        %s248 = smul.addr %s247, 4
        %s249 = scalar_lea.vmem %s0, %s248
        %v253 = vld [vmem:[%s249] sm:$0xff]
        %v254 = vld [vmem:[%s2] sm:$0xf]
        %256 = vset.pattern.permute.xlu0 0
        %257 = vperm.xlu0 %256, %v254
        %v258 = vpop.permute.xlu0 %257
        %v260 = vunpack.c.l.s4 839922192
        %v261 = vunpack.c.0.s8 %v260
        %v262 = vperm.slane %v258, %v261
        %v264 = vmul.f32 %v253, %v262
        %v265 = vld [vmem:[%s3] sm:$0xf]
        %267 = vset.pattern.permute.xlu0 0
        %268 = vperm.xlu0 %267, %v265
        %v269 = vpop.permute.xlu0 %268
        %v271 = vunpack.c.l.s4 839922192
        %v272 = vunpack.c.0.s8 %v271
        %v273 = vperm.slane %v269, %v272
        %v275 = vadd.f32 %v264, %v273
        %v276 = vmax.f32 %v275, 0.0
        %278 = vst [vmem:[#allocation1] ss:$2 sm:$0xff] %v276
        %v279 = vld.sshfl [vmem:[#allocation1] sm:$0xff pattern:$0x75316420]
        %v280 = vld.sshfl [vmem:[#allocation1 + $0x8] sm:$0xff pattern:$0x75316420]
        %v283 = vpack.c.bf16 %v279, %v279
        %v284 = vpack.c.bf16 %v280, %v280
        %v285 = vld [vmem:[%s1] sm:$0xf]
        %v286 = vld [vmem:[%s1 + $0x4] sm:$0xf]
        %v287 = vld [vmem:[%s5] sm:$0xff]
        %v288 = vld [vmem:[%s5 + $0x8] sm:$0xff]
        %290 = vset.pattern.permute.xlu0 0
        %291 = vperm.xlu0 %290, %v287
        %v292 = vpop.permute.xlu0 %291
        %295 = vset.pattern.permute.xlu0 0
        %296 = vperm.xlu0 %295, %v288
        %v297 = vpop.permute.xlu0 %296
        %v301 = vunpack.c.l.b16 %v285
        %v302 = vunpack.c.l.b16 %v286
        %v303 = vpack.c.b16 %v302, %v301
        %vm304 = vcmask 31744
        %v306 = vsel %vm304, %v303, 0
        %vm308 = vcmask 1041408
        %v310 = vsel %vm308, %v283, 0
        %v313 = vsel %vm308, %v284, 0
        %315 = vmatpush.bf16.msra.mxu0 0
        %316 = vmatpush.bf16.msra.mxu0 0
        %317 = vmatpush.bf16.msra.mxu0 0
        %318 = vmatpush.bf16.msra.mxu0 0
        %319 = vmatpush.bf16.msra.mxu0 0
        %320 = vmatpush.bf16.msra.mxu0 0
        %321 = vmatpush.bf16.msra.mxu0 0
        %322 = vmatpush.bf16.msra.mxu0 %v310
        %323 = vmatmul.bf16.gmra.mxu0 %v306
        %v324 = vpop.f32.mrf.mxu0
        %v325 = vadd.f32 %v292, %v324
        %v326 = vpop.f32.mrf.mxu0
        %v327 = vadd.f32 %v297, %v326
        %328 = vdwg.mxu0
        %329 = vmatpush.bf16.msra.mxu0 0
        %330 = vmatpush.bf16.msra.mxu0 0
        %331 = vmatpush.bf16.msra.mxu0 0
        %332 = vmatpush.bf16.msra.mxu0 0
        %333 = vmatpush.bf16.msra.mxu0 0
        %334 = vmatpush.bf16.msra.mxu0 0
        %335 = vmatpush.bf16.msra.mxu0 0
        %336 = vmatpush.bf16.msra.mxu0 %v313
        %337 = vmatmul.bf16.gmra.mxu0 %v306
        %v338 = vpop.f32.mrf.mxu0
        %v339 = vadd.f32 %v292, %v338
        %v340 = vpop.f32.mrf.mxu0
        %v341 = vadd.f32 %v297, %v340
        %342 = vdwg.mxu0
        %v343 = vmax.f32 %v325, 0.0
        %v344 = vmax.f32 %v339, 0.0
        %v345 = vmax.f32 %v327, 0.0
        %v346 = vmax.f32 %v341, 0.0
        %v347 = vlaneseq
        %v348 = vand.u32 %v347, 127
        %v349 = vadd.s32 %v348, 128
        %v350 = vpack.c.bf16 %v344, %v343
        %v351 = vpack.c.bf16 %v346, %v345
        %vm352 = vcmp.lt.s32.totalorder %v348, 0
        %v353 = vsub.s32 0, %v348
        %v354 = vsel %vm352, %v353, %v348
        %v355 = vshrl.u32 %v354, 4
        %v356 = vand.u32 %v354, 15
        %v357 = vsub.s32 0, %v356
        %v358 = vsel %vm352, %v357, %v356
        %vm359 = vcmp.lt.s32.totalorder %v349, 0
        %v360 = vsub.s32 0, %v349
        %v361 = vsel %vm359, %v360, %v349
        %v362 = vshrl.u32 %v361, 4
        %v363 = vand.u32 %v361, 15
        %v364 = vsub.s32 0, %v363
        %v365 = vsel %vm359, %v364, %v363
        %vm366 = vcmp.ne.s32.totalorder %v358, 0
        %vm367 = vcmp.ne.s32.totalorder %v365, 0
        %vm368 = vcmp.lt.s32.totalorder %v358, 0
        %vm369 = vcmp.lt.s32.totalorder %v365, 0
        %vm370 = vmand %vm368, %vm366
        %vm371 = vmand %vm369, %vm367
        %v372 = vadd.s32 %v358, 16
        %v373 = vadd.s32 %v365, 16
        %v374 = vsel %vm370, %v372, %v358
        %v375 = vsel %vm371, %v373, %v365
        %vm376 = vcmp.ne.s32.totalorder %v374, 0
        %vm377 = vcmp.ne.s32.totalorder %v375, 0
        %vm378 = vcmp.ne.s32.totalorder %v374, 15
        %vm379 = vcmp.ne.s32.totalorder %v375, 15
        %v382 = vunpack.c.l.b16 %v350
        %v383 = vunpack.c.h.b16 %v350
        %v384 = vunpack.c.l.b16 %v351
        %v385 = vunpack.c.h.b16 %v351
        %v386 = vpack.c.b16 %v384, %v382
        %v387 = vpack.c.b16 %v385, %v383
        %388 = vrot.lane.b32.xlu0 %v386, 17
        %v389 = vpop.permute.xlu0 %388
        %390 = vrot.lane.b32.xlu0 %v387, 17
        %v391 = vpop.permute.xlu0 %390
        %vm392 = vcmask 138240
        %v393 = vsel %vm392, %v389, %v391
        %vm395 = vcmask 138240
        %v398 = vsel %vm395, 0, %v389
        %v401 = vsel %vm395, %v391, 0
        %v403 = vsel %vm376, 1, 0
        %v404 = vsel %vm377, 1, 0
        %vm405 = vcmp.eq.s32.totalorder %v403, 1
        %vm406 = vcmp.eq.s32.totalorder %v404, 1
        %vm407 = vmpackc.low %vm406, %vm405
        %v408 = vsel %vm407, 65537, 0
        %v409 = vperm.slane %v408, 0
        %v410 = vperm.slane %v408, 4
        %v411 = vunpack.c.l.b16 %v409
        %v412 = vunpack.c.h.b16 %v409
        %v413 = vunpack.c.l.b16 0
        %v414 = vunpack.c.h.b16 0
        %vm415 = vcmp.ne.s32.totalorder %v411, %v413
        %vm416 = vcmp.ne.s32.totalorder %v412, %v414
        %vm417 = vmpackc.low %vm416, %vm415
        %v418 = vunpack.c.l.b16 %v410
        %v419 = vunpack.c.h.b16 %v410
        %v420 = vunpack.c.l.b16 0
        %v421 = vunpack.c.h.b16 0
        %vm422 = vcmp.ne.s32.totalorder %v418, %v420
        %vm423 = vcmp.ne.s32.totalorder %v419, %v421
        %vm424 = vmpackc.low %vm423, %vm422
        %v425 = vsel %vm417, %v398, 0
        %v426 = vsel %vm424, %v393, 0
        %v429 = vunpack.c.l.b16 %v425
        %v430 = vunpack.c.l.b16 %v426
        %v431 = vunpack.c.h.b16 %v425
        %v432 = vunpack.c.h.b16 %v426
        %v433 = vpack.c.b16 %v430, %v429
        %v434 = vpack.c.b16 %v432, %v431
        %437 = vst [vmem:[#allocation2] sm:$0xff] %v433
        %438 = vst [vmem:[#allocation2 + $0x8] sm:$0xff] %v434
        %v441 = vunpack.c.l.b16 %v398
        %v442 = vunpack.c.l.b16 %v393
        %v443 = vunpack.c.l.b16 %v401
        %v444 = vunpack.c.h.b16 %v398
        %v445 = vunpack.c.h.b16 %v393
        %v446 = vunpack.c.h.b16 %v401
        %v447 = vpack.c.b16 %v442, %v441
        %v448 = vpack.c.b16 %v443, %v443
        %v449 = vpack.c.b16 %v445, %v444
        %v450 = vpack.c.b16 %v446, %v446
        %451 = vrot.lane.b32.xlu0 %v447, 127
        %v452 = vpop.permute.xlu0 %451
        %453 = vrot.lane.b32.xlu0 %v448, 127
        %v454 = vpop.permute.xlu0 %453
        %455 = vrot.lane.b32.xlu0 %v449, 127
        %v456 = vpop.permute.xlu0 %455
        %457 = vrot.lane.b32.xlu0 %v450, 127
        %v458 = vpop.permute.xlu0 %457
        %v459 = vrot.slane %v452, 4
        %v460 = vrot.slane %v454, 4
        %v461 = vrot.slane %v456, 4
        %v462 = vrot.slane %v458, 4
        %vm463 = vcmask 1043456
        %v464 = vsel %vm463, %v459, %v460
        %vm465 = vcmask 1039360
        %v466 = vsel %vm465, %v452, %v464
        %v467 = vsel %vm463, %v461, %v462
        %v468 = vsel %vm465, %v456, %v467
        %471 = vst [vmem:[#allocation2 + $0x10] sm:$0xff] %v466
        %472 = vst [vmem:[#allocation2 + $0x18] sm:$0xff] %v468
        %v473 = vsel %vm378, 1, 0
        %v474 = vsel %vm379, 1, 0
        %vm475 = vcmp.eq.s32.totalorder %v473, 1
        %vm476 = vcmp.eq.s32.totalorder %v474, 1
        %vm477 = vmpackc.low %vm476, %vm475
        %v478 = vsel %vm477, 65537, 0
        %v479 = vperm.slane %v478, 0
        %v480 = vperm.slane %v478, 4
        %481 = vrot.lane.b32.xlu0 %v479, 2
        %v482 = vpop.permute.xlu0 %481
        %483 = vrot.lane.b32.xlu0 %v480, 2
        %v484 = vpop.permute.xlu0 %483
        %vm485 = vcmask 15360
        %v486 = vsel %vm485, %v482, %v484
        %v487 = vunpack.c.l.b16 %v482
        %v488 = vunpack.c.h.b16 %v482
        %v489 = vunpack.c.l.b16 0
        %v490 = vunpack.c.h.b16 0
        %vm491 = vcmp.ne.s32.totalorder %v487, %v489
        %vm492 = vcmp.ne.s32.totalorder %v488, %v490
        %vm493 = vmpackc.low %vm492, %vm491
        %v494 = vunpack.c.l.b16 %v486
        %v495 = vunpack.c.h.b16 %v486
        %v496 = vunpack.c.l.b16 0
        %v497 = vunpack.c.h.b16 0
        %vm498 = vcmp.ne.s32.totalorder %v494, %v496
        %vm499 = vcmp.ne.s32.totalorder %v495, %v497
        %vm500 = vmpackc.low %vm499, %vm498
        %v501 = vunpack.c.l.b16 %v484
        %v502 = vunpack.c.h.b16 %v484
        %v503 = vunpack.c.l.b16 0
        %v504 = vunpack.c.h.b16 0
        %vm505 = vcmp.ne.s32.totalorder %v501, %v503
        %vm506 = vcmp.ne.s32.totalorder %v502, %v504
        %vm507 = vmpackc.low %vm506, %vm505
        %v508 = vsel %vm493, %v398, 0
        %v509 = vsel %vm500, %v393, 0
        %v510 = vsel %vm507, %v401, 0
        %v514 = vunpack.c.l.b16 %v508
        %v515 = vunpack.c.l.b16 %v509
        %v516 = vunpack.c.l.b16 %v510
        %v517 = vunpack.c.h.b16 %v508
        %v518 = vunpack.c.h.b16 %v509
        %v519 = vunpack.c.h.b16 %v510
        %v520 = vpack.c.b16 %v515, %v514
        %v521 = vpack.c.b16 %v516, %v516
        %v522 = vpack.c.b16 %v518, %v517
        %v523 = vpack.c.b16 %v519, %v519
        %524 = vrot.lane.b32.xlu0 %v520, 126
        %v525 = vpop.permute.xlu0 %524
        %526 = vrot.lane.b32.xlu0 %v521, 126
        %v527 = vpop.permute.xlu0 %526
        %528 = vrot.lane.b32.xlu0 %v522, 126
        %v529 = vpop.permute.xlu0 %528
        %530 = vrot.lane.b32.xlu0 %v523, 126
        %v531 = vpop.permute.xlu0 %530
        %v532 = vrot.slane %v525, 4
        %v533 = vrot.slane %v527, 4
        %v534 = vrot.slane %v529, 4
        %v535 = vrot.slane %v531, 4
        %v536 = vsel %vm463, %v532, %v533
        %vm537 = vcmask 1031168
        %v538 = vsel %vm537, %v525, %v536
        %v539 = vsel %vm463, %v534, %v535
        %v540 = vsel %vm537, %v529, %v539
        %543 = vst [vmem:[#allocation2 + $0x20] sm:$0xff] %v538
        %544 = vst [vmem:[#allocation2 + $0x28] sm:$0xff] %v540
        %545 = vrot.lane.b32.xlu0 %v409, 16
        %v546 = vpop.permute.xlu0 %545
        %547 = vrot.lane.b32.xlu0 %v410, 16
        %v548 = vpop.permute.xlu0 %547
        %vm549 = vcmask 130048
        %v550 = vsel %vm549, %v546, %v548
        %v551 = vunpack.c.l.b16 %v546
        %v552 = vunpack.c.h.b16 %v546
        %v553 = vunpack.c.l.b16 0
        %v554 = vunpack.c.h.b16 0
        %vm555 = vcmp.ne.s32.totalorder %v551, %v553
        %vm556 = vcmp.ne.s32.totalorder %v552, %v554
        %vm557 = vmpackc.low %vm556, %vm555
        %v558 = vunpack.c.l.b16 %v550
        %v559 = vunpack.c.h.b16 %v550
        %v560 = vunpack.c.l.b16 0
        %v561 = vunpack.c.h.b16 0
        %vm562 = vcmp.ne.s32.totalorder %v558, %v560
        %vm563 = vcmp.ne.s32.totalorder %v559, %v561
        %vm564 = vmpackc.low %vm563, %vm562
        %v565 = vunpack.c.l.b16 %v548
        %v566 = vunpack.c.h.b16 %v548
        %v567 = vunpack.c.l.b16 0
        %v568 = vunpack.c.h.b16 0
        %vm569 = vcmp.ne.s32.totalorder %v565, %v567
        %vm570 = vcmp.ne.s32.totalorder %v566, %v568
        %vm571 = vmpackc.low %vm570, %vm569
        %v572 = vsel %vm557, %v398, 0
        %v573 = vsel %vm564, %v393, 0
        %v574 = vsel %vm571, %v401, 0
        %v578 = vunpack.c.l.b16 %v572
        %v579 = vunpack.c.l.b16 %v573
        %v580 = vunpack.c.l.b16 %v574
        %v581 = vunpack.c.h.b16 %v572
        %v582 = vunpack.c.h.b16 %v573
        %v583 = vunpack.c.h.b16 %v574
        %v584 = vpack.c.b16 %v579, %v578
        %v585 = vpack.c.b16 %v580, %v580
        %v586 = vpack.c.b16 %v582, %v581
        %v587 = vpack.c.b16 %v583, %v583
        %588 = vrot.lane.b32.xlu0 %v584, 112
        %v589 = vpop.permute.xlu0 %588
        %590 = vrot.lane.b32.xlu0 %v585, 112
        %v591 = vpop.permute.xlu0 %590
        %592 = vrot.lane.b32.xlu0 %v586, 112
        %v593 = vpop.permute.xlu0 %592
        %594 = vrot.lane.b32.xlu0 %v587, 112
        %v595 = vpop.permute.xlu0 %594
        %v596 = vrot.slane %v589, 4
        %v597 = vrot.slane %v591, 4
        %v598 = vrot.slane %v593, 4
        %v599 = vrot.slane %v595, 4
        %v600 = vsel %vm463, %v596, %v597
        %vm601 = vcmask 916480
        %v602 = vsel %vm601, %v589, %v600
        %v603 = vsel %vm463, %v598, %v599
        %v604 = vsel %vm601, %v593, %v603
        %607 = vst [vmem:[#allocation2 + $0x30] sm:$0xff] %v602
        %608 = vst [vmem:[#allocation2 + $0x38] sm:$0xff] %v604
        %609 = vrot.lane.b32.xlu0 %v447, 111
        %v610 = vpop.permute.xlu0 %609
        %611 = vrot.lane.b32.xlu0 %v448, 111
        %v612 = vpop.permute.xlu0 %611
        %613 = vrot.lane.b32.xlu0 %v449, 111
        %v614 = vpop.permute.xlu0 %613
        %615 = vrot.lane.b32.xlu0 %v450, 111
        %v616 = vpop.permute.xlu0 %615
        %v617 = vrot.slane %v610, 4
        %v618 = vrot.slane %v612, 4
        %v619 = vrot.slane %v614, 4
        %v620 = vrot.slane %v616, 4
        %v621 = vsel %vm463, %v617, %v618
        %vm622 = vcmask 908288
        %v623 = vsel %vm622, %v610, %v621
        %v624 = vsel %vm463, %v619, %v620
        %v625 = vsel %vm622, %v614, %v624
        %628 = vst [vmem:[#allocation2 + $0x40] sm:$0xff] %v623
        %629 = vst [vmem:[#allocation2 + $0x48] sm:$0xff] %v625
        %630 = vrot.lane.b32.xlu0 %v479, 18
        %v631 = vpop.permute.xlu0 %630
        %632 = vrot.lane.b32.xlu0 %v480, 18
        %v633 = vpop.permute.xlu0 %632
        %vm634 = vcmask 146432
        %v635 = vsel %vm634, %v631, %v633
        %v636 = vunpack.c.l.b16 %v631
        %v637 = vunpack.c.h.b16 %v631
        %v638 = vunpack.c.l.b16 0
        %v639 = vunpack.c.h.b16 0
        %vm640 = vcmp.ne.s32.totalorder %v636, %v638
        %vm641 = vcmp.ne.s32.totalorder %v637, %v639
        %vm642 = vmpackc.low %vm641, %vm640
        %v643 = vunpack.c.l.b16 %v635
        %v644 = vunpack.c.h.b16 %v635
        %v645 = vunpack.c.l.b16 0
        %v646 = vunpack.c.h.b16 0
        %vm647 = vcmp.ne.s32.totalorder %v643, %v645
        %vm648 = vcmp.ne.s32.totalorder %v644, %v646
        %vm649 = vmpackc.low %vm648, %vm647
        %v650 = vunpack.c.l.b16 %v633
        %v651 = vunpack.c.h.b16 %v633
        %v652 = vunpack.c.l.b16 0
        %v653 = vunpack.c.h.b16 0
        %vm654 = vcmp.ne.s32.totalorder %v650, %v652
        %vm655 = vcmp.ne.s32.totalorder %v651, %v653
        %vm656 = vmpackc.low %vm655, %vm654
        %v657 = vsel %vm642, %v398, 0
        %v658 = vsel %vm649, %v393, 0
        %v659 = vsel %vm656, %v401, 0
        %v663 = vunpack.c.l.b16 %v657
        %v664 = vunpack.c.l.b16 %v658
        %v665 = vunpack.c.l.b16 %v659
        %v666 = vunpack.c.h.b16 %v657
        %v667 = vunpack.c.h.b16 %v658
        %v668 = vunpack.c.h.b16 %v659
        %v669 = vpack.c.b16 %v664, %v663
        %v670 = vpack.c.b16 %v665, %v665
        %v671 = vpack.c.b16 %v667, %v666
        %v672 = vpack.c.b16 %v668, %v668
        %673 = vrot.lane.b32.xlu0 %v669, 110
        %v674 = vpop.permute.xlu0 %673
        %675 = vrot.lane.b32.xlu0 %v670, 110
        %v676 = vpop.permute.xlu0 %675
        %677 = vrot.lane.b32.xlu0 %v671, 110
        %v678 = vpop.permute.xlu0 %677
        %679 = vrot.lane.b32.xlu0 %v672, 110
        %v680 = vpop.permute.xlu0 %679
        %v681 = vrot.slane %v674, 4
        %v682 = vrot.slane %v676, 4
        %v683 = vrot.slane %v678, 4
        %v684 = vrot.slane %v680, 4
        %v685 = vsel %vm463, %v681, %v682
        %vm686 = vcmask 900096
        %v687 = vsel %vm686, %v674, %v685
        %v688 = vsel %vm463, %v683, %v684
        %v689 = vsel %vm686, %v678, %v688
        %692 = vst [vmem:[#allocation2 + $0x50] sm:$0xff] %v687
        %693 = vst [vmem:[#allocation2 + $0x58] sm:$0xff] %v689
        %694 = vrot.lane.b32.xlu0 %v409, 32
        %v695 = vpop.permute.xlu0 %694
        %696 = vrot.lane.b32.xlu0 %v410, 32
        %v697 = vpop.permute.xlu0 %696
        %vm698 = vcmask 261120
        %v699 = vsel %vm698, %v695, %v697
        %v700 = vunpack.c.l.b16 %v695
        %v701 = vunpack.c.h.b16 %v695
        %v702 = vunpack.c.l.b16 0
        %v703 = vunpack.c.h.b16 0
        %vm704 = vcmp.ne.s32.totalorder %v700, %v702
        %vm705 = vcmp.ne.s32.totalorder %v701, %v703
        %vm706 = vmpackc.low %vm705, %vm704
        %v707 = vunpack.c.l.b16 %v699
        %v708 = vunpack.c.h.b16 %v699
        %v709 = vunpack.c.l.b16 0
        %v710 = vunpack.c.h.b16 0
        %vm711 = vcmp.ne.s32.totalorder %v707, %v709
        %vm712 = vcmp.ne.s32.totalorder %v708, %v710
        %vm713 = vmpackc.low %vm712, %vm711
        %v714 = vunpack.c.l.b16 %v697
        %v715 = vunpack.c.h.b16 %v697
        %v716 = vunpack.c.l.b16 0
        %v717 = vunpack.c.h.b16 0
        %vm718 = vcmp.ne.s32.totalorder %v714, %v716
        %vm719 = vcmp.ne.s32.totalorder %v715, %v717
        %vm720 = vmpackc.low %vm719, %vm718
        %v721 = vsel %vm706, %v398, 0
        %v722 = vsel %vm713, %v393, 0
        %v723 = vsel %vm720, %v401, 0
        %v727 = vunpack.c.l.b16 %v721
        %v728 = vunpack.c.l.b16 %v722
        %v729 = vunpack.c.l.b16 %v723
        %v730 = vunpack.c.h.b16 %v721
        %v731 = vunpack.c.h.b16 %v722
        %v732 = vunpack.c.h.b16 %v723
        %v733 = vpack.c.b16 %v728, %v727
        %v734 = vpack.c.b16 %v729, %v729
        %v735 = vpack.c.b16 %v731, %v730
        %v736 = vpack.c.b16 %v732, %v732
        %737 = vrot.lane.b32.xlu0 %v733, 96
        %v738 = vpop.permute.xlu0 %737
        %739 = vrot.lane.b32.xlu0 %v734, 96
        %v740 = vpop.permute.xlu0 %739
        %741 = vrot.lane.b32.xlu0 %v735, 96
        %v742 = vpop.permute.xlu0 %741
        %743 = vrot.lane.b32.xlu0 %v736, 96
        %v744 = vpop.permute.xlu0 %743
        %v745 = vrot.slane %v738, 4
        %v746 = vrot.slane %v740, 4
        %v747 = vrot.slane %v742, 4
        %v748 = vrot.slane %v744, 4
        %v749 = vsel %vm463, %v745, %v746
        %vm750 = vcmask 785408
        %v751 = vsel %vm750, %v738, %v749
        %v752 = vsel %vm463, %v747, %v748
        %v753 = vsel %vm750, %v742, %v752
        %756 = vst [vmem:[#allocation2 + $0x60] sm:$0xff] %v751
        %757 = vst [vmem:[#allocation2 + $0x68] sm:$0xff] %v753
        %758 = vrot.lane.b32.xlu0 %v447, 95
        %v759 = vpop.permute.xlu0 %758
        %760 = vrot.lane.b32.xlu0 %v448, 95
        %v761 = vpop.permute.xlu0 %760
        %762 = vrot.lane.b32.xlu0 %v449, 95
        %v763 = vpop.permute.xlu0 %762
        %764 = vrot.lane.b32.xlu0 %v450, 95
        %v765 = vpop.permute.xlu0 %764
        %v766 = vrot.slane %v759, 4
        %v767 = vrot.slane %v761, 4
        %v768 = vrot.slane %v763, 4
        %v769 = vrot.slane %v765, 4
        %v770 = vsel %vm463, %v766, %v767
        %vm771 = vcmask 777216
        %v772 = vsel %vm771, %v759, %v770
        %v773 = vsel %vm463, %v768, %v769
        %v774 = vsel %vm771, %v763, %v773
        %777 = vst [vmem:[#allocation2 + $0x70] sm:$0xff] %v772
        %778 = vst [vmem:[#allocation2 + $0x78] sm:$0xff] %v774
        %779 = vrot.lane.b32.xlu0 %v479, 34
        %v780 = vpop.permute.xlu0 %779
        %781 = vrot.lane.b32.xlu0 %v480, 34
        %v782 = vpop.permute.xlu0 %781
        %vm783 = vcmask 277504
        %v784 = vsel %vm783, %v780, %v782
        %v785 = vunpack.c.l.b16 %v780
        %v786 = vunpack.c.h.b16 %v780
        %v787 = vunpack.c.l.b16 0
        %v788 = vunpack.c.h.b16 0
        %vm789 = vcmp.ne.s32.totalorder %v785, %v787
        %vm790 = vcmp.ne.s32.totalorder %v786, %v788
        %vm791 = vmpackc.low %vm790, %vm789
        %v792 = vunpack.c.l.b16 %v784
        %v793 = vunpack.c.h.b16 %v784
        %v794 = vunpack.c.l.b16 0
        %v795 = vunpack.c.h.b16 0
        %vm796 = vcmp.ne.s32.totalorder %v792, %v794
        %vm797 = vcmp.ne.s32.totalorder %v793, %v795
        %vm798 = vmpackc.low %vm797, %vm796
        %v799 = vunpack.c.l.b16 %v782
        %v800 = vunpack.c.h.b16 %v782
        %v801 = vunpack.c.l.b16 0
        %v802 = vunpack.c.h.b16 0
        %vm803 = vcmp.ne.s32.totalorder %v799, %v801
        %vm804 = vcmp.ne.s32.totalorder %v800, %v802
        %vm805 = vmpackc.low %vm804, %vm803
        %v806 = vsel %vm791, %v398, 0
        %v807 = vsel %vm798, %v393, 0
        %v808 = vsel %vm805, %v401, 0
        %v812 = vunpack.c.l.b16 %v806
        %v813 = vunpack.c.l.b16 %v807
        %v814 = vunpack.c.l.b16 %v808
        %v815 = vunpack.c.h.b16 %v806
        %v816 = vunpack.c.h.b16 %v807
        %v817 = vunpack.c.h.b16 %v808
        %v818 = vpack.c.b16 %v813, %v812
        %v819 = vpack.c.b16 %v814, %v814
        %v820 = vpack.c.b16 %v816, %v815
        %v821 = vpack.c.b16 %v817, %v817
        %822 = vrot.lane.b32.xlu0 %v818, 94
        %v823 = vpop.permute.xlu0 %822
        %824 = vrot.lane.b32.xlu0 %v819, 94
        %v825 = vpop.permute.xlu0 %824
        %826 = vrot.lane.b32.xlu0 %v820, 94
        %v827 = vpop.permute.xlu0 %826
        %828 = vrot.lane.b32.xlu0 %v821, 94
        %v829 = vpop.permute.xlu0 %828
        %v830 = vrot.slane %v823, 4
        %v831 = vrot.slane %v825, 4
        %v832 = vrot.slane %v827, 4
        %v833 = vrot.slane %v829, 4
        %v834 = vsel %vm463, %v830, %v831
        %vm835 = vcmask 769024
        %v836 = vsel %vm835, %v823, %v834
        %v837 = vsel %vm463, %v832, %v833
        %v838 = vsel %vm835, %v827, %v837
        %841 = vst [vmem:[#allocation2 + $0x80] sm:$0xff] %v836
        %842 = vst [vmem:[#allocation2 + $0x88] sm:$0xff] %v838
        %v843 = vld [vmem:[%s4] sm:$0xf]
        %v844 = vld [vmem:[#allocation2] sm:$0xff]
        %v845 = vld [vmem:[#allocation2 + $0x8] sm:$0xff]
        %v846 = vld [vmem:[#allocation2 + $0x10] sm:$0xff]
        %v847 = vld [vmem:[#allocation2 + $0x18] sm:$0xff]
        %v848 = vld [vmem:[#allocation2 + $0x20] sm:$0xff]
        %v849 = vld [vmem:[#allocation2 + $0x28] sm:$0xff]
        %v850 = vld [vmem:[#allocation2 + $0x30] sm:$0xff]
        %v851 = vld [vmem:[#allocation2 + $0x38] sm:$0xff]
        %v852 = vld [vmem:[#allocation2 + $0x40] sm:$0xff]
        %v853 = vld [vmem:[#allocation2 + $0x48] sm:$0xff]
        %v854 = vld [vmem:[#allocation2 + $0x50] sm:$0xff]
        %v855 = vld [vmem:[#allocation2 + $0x58] sm:$0xff]
        %v856 = vld [vmem:[#allocation2 + $0x60] sm:$0xff]
        %v857 = vld [vmem:[#allocation2 + $0x68] sm:$0xff]
        %v858 = vld [vmem:[#allocation2 + $0x70] sm:$0xff]
        %v859 = vld [vmem:[#allocation2 + $0x78] sm:$0xff]
        %v860 = vld [vmem:[#allocation2 + $0x80] sm:$0xff]
        %v861 = vld [vmem:[#allocation2 + $0x88] sm:$0xff]
        %863 = vst [vmem:[#allocation1] ss:$4 sm:$0xff] %v843
        %v864 = vld.sshfl [vmem:[#allocation1] sm:$0xff pattern:$0x73625140]
        %v865 = vld.sshfl [vmem:[#allocation1 + $0x8] sm:$0xff pattern:$0x73625140]
        %v885 = vunpack.c.l.b16 %v844
        %v886 = vunpack.c.h.b16 %v844
        %v887 = vunpack.c.l.b16 %v845
        %v888 = vunpack.c.h.b16 %v845
        %v889 = vunpack.c.l.b16 %v846
        %v890 = vunpack.c.h.b16 %v846
        %v891 = vunpack.c.l.b16 %v847
        %v892 = vunpack.c.h.b16 %v847
        %v893 = vunpack.c.l.b16 %v848
        %v894 = vunpack.c.h.b16 %v848
        %v895 = vunpack.c.l.b16 %v849
        %v896 = vunpack.c.h.b16 %v849
        %v897 = vunpack.c.l.b16 %v850
        %v898 = vunpack.c.h.b16 %v850
        %v899 = vunpack.c.l.b16 %v851
        %v900 = vunpack.c.h.b16 %v851
        %v901 = vunpack.c.l.b16 %v852
        %v902 = vunpack.c.h.b16 %v852
        %v903 = vunpack.c.l.b16 %v853
        %v904 = vunpack.c.h.b16 %v853
        %v905 = vunpack.c.l.b16 %v854
        %v906 = vunpack.c.h.b16 %v854
        %v907 = vunpack.c.l.b16 %v855
        %v908 = vunpack.c.h.b16 %v855
        %v909 = vunpack.c.l.b16 %v856
        %v910 = vunpack.c.h.b16 %v856
        %v911 = vunpack.c.l.b16 %v857
        %v912 = vunpack.c.h.b16 %v857
        %v913 = vunpack.c.l.b16 %v858
        %v914 = vunpack.c.h.b16 %v858
        %v915 = vunpack.c.l.b16 %v859
        %v916 = vunpack.c.h.b16 %v859
        %v917 = vunpack.c.l.b16 %v860
        %v918 = vunpack.c.h.b16 %v860
        %v919 = vunpack.c.l.b16 %v861
        %v920 = vunpack.c.h.b16 %v861
        %v921 = vpack.c.b16 %v887, %v885
        %v922 = vpack.c.b16 %v888, %v886
        %v923 = vpack.c.b16 %v891, %v889
        %v924 = vpack.c.b16 %v892, %v890
        %v925 = vpack.c.b16 %v895, %v893
        %v926 = vpack.c.b16 %v896, %v894
        %v927 = vpack.c.b16 %v899, %v897
        %v928 = vpack.c.b16 %v900, %v898
        %v929 = vpack.c.b16 %v903, %v901
        %v930 = vpack.c.b16 %v904, %v902
        %v931 = vpack.c.b16 %v907, %v905
        %v932 = vpack.c.b16 %v908, %v906
        %v933 = vpack.c.b16 %v911, %v909
        %v934 = vpack.c.b16 %v912, %v910
        %v935 = vpack.c.b16 %v915, %v913
        %v936 = vpack.c.b16 %v916, %v914
        %v937 = vpack.c.b16 %v919, %v917
        %v938 = vpack.c.b16 %v920, %v918
        %vm957 = vcmask 130048
        %v958 = vsel %vm957, %v865, 0
        %960 = vmatpush.bf16.msra.mxu0 %v935
        %961 = vmatpush.bf16.msra.mxu0 %v933
        %962 = vmatpush.bf16.msra.mxu0 %v931
        %963 = vmatpush.bf16.msra.mxu0 %v929
        %964 = vmatpush.bf16.msra.mxu0 %v927
        %965 = vmatpush.bf16.msra.mxu0 %v925
        %966 = vmatpush.bf16.msra.mxu0 %v923
        %967 = vmatpush.bf16.msra.mxu0 %v921
        %968 = vmatmul.bf16.gmra.mxu0 %v864
        %v969 = vpop.f32.mrf.mxu0
        %v970 = vadd.f32 0.0, %v969
        %v971 = vpop.f32.mrf.mxu0
        %972 = vdwg.mxu0
        %973 = vmatpush.bf16.msra.mxu0 0
        %974 = vmatpush.bf16.msra.mxu0 0
        %975 = vmatpush.bf16.msra.mxu0 0
        %976 = vmatpush.bf16.msra.mxu0 0
        %977 = vmatpush.bf16.msra.mxu0 0
        %978 = vmatpush.bf16.msra.mxu0 0
        %979 = vmatpush.bf16.msra.mxu0 0
        %980 = vmatpush.bf16.msra.mxu0 %v937
        %981 = vmatmul.bf16.gmra.mxu0 %v958
        %v982 = vpop.f32.mrf.mxu0
        %v983 = vadd.f32 %v970, %v982
        %v984 = vpop.f32.mrf.mxu0
        %985 = vdwg.mxu0
        %986 = vmatpush.bf16.msra.mxu0 %v936
        %987 = vmatpush.bf16.msra.mxu0 %v934
        %988 = vmatpush.bf16.msra.mxu0 %v932
        %989 = vmatpush.bf16.msra.mxu0 %v930
        %990 = vmatpush.bf16.msra.mxu0 %v928
        %991 = vmatpush.bf16.msra.mxu0 %v926
        %992 = vmatpush.bf16.msra.mxu0 %v924
        %993 = vmatpush.bf16.msra.mxu0 %v922
        %994 = vmatmul.bf16.gmra.mxu0 %v864
        %v995 = vpop.f32.mrf.mxu0
        %v996 = vadd.f32 0.0, %v995
        %v997 = vpop.f32.mrf.mxu0
        %998 = vdwg.mxu0
        %999 = vmatpush.bf16.msra.mxu0 0
        %1000 = vmatpush.bf16.msra.mxu0 0
        %1001 = vmatpush.bf16.msra.mxu0 0
        %1002 = vmatpush.bf16.msra.mxu0 0
        %1003 = vmatpush.bf16.msra.mxu0 0
        %1004 = vmatpush.bf16.msra.mxu0 0
        %1005 = vmatpush.bf16.msra.mxu0 0
        %1006 = vmatpush.bf16.msra.mxu0 %v938
        %1007 = vmatmul.bf16.gmra.mxu0 %v958
        %v1008 = vpop.f32.mrf.mxu0
        %v1009 = vadd.f32 %v996, %v1008
        %v1010 = vpop.f32.mrf.mxu0
        %1011 = vdwg.mxu0
        %1013 = vst [vmem:[#allocation1] ss:$2 sm:$0xff] %v253
        %v1014 = vld.sshfl [vmem:[#allocation1] sm:$0xff pattern:$0x75316420]
        %v1015 = vld.sshfl [vmem:[#allocation1 + $0x8] sm:$0xff pattern:$0x75316420]
        %v1020 = vrot.slane %v983, 4
        %v1021 = vrot.slane %v1009, 4
        %vm1024 = vcmask 1043456
        %v1025 = vsel %vm1024, %v1014, %v1020
        %v1026 = vsel %vm1024, %v1015, %v1021
        %1027 = vst [vmem:[%s244] sm:$0xff] %v1025
        %1028 = vst [vmem:[%s244 + $0x8] sm:$0xff] %v1026
        %s1029 = sand.u32 %s159, 1
        %s1030 = scalar_lea.sflag [#allocation4], %s1029
        %s1031 = sand.u32 %s159, 1
        %s1032 = smul.addr %s1031, 16
        %s1033 = scalar_lea.vmem [#allocation3], %s1032
        // Predicated region
        $region45: #{tpu_custom_call.1} parent=43 // pred_check
          %p1034 = pneg %p169
        $region46: #{tpu_custom_call.1} parent=43 // pred_check_branch
          %1036 = sbr.rel (%p1034) target = $region48
        $region47: #{tpu_custom_call.1} parent=43 // pred_region
          %1038 = vsyncadd %s1030, 0
          %s1039 = smul.addr %s20, 2
          %s1040 = smul.addr %s1039, 8
          %s1041 = scalar_lea.hbm %s6, %s1040
          %s1043 = sshll.u32 %s1033, 4
          %s1044 = int_to_ptr.vmem [resolvable:$true] %s1043
          %s1045 = sshll.u32 %s1041, 4
          %s1046 = int_to_ptr.hbm [resolvable:$true] %s1045
          %1048 = dma.vmem_to_hbm [thread:$0]  %s1044, 256, %s1046, %s1030
        $region48: #{tpu_custom_call.1} parent=43 // pred_fallthru
          _
      $region44: #{tpu_custom_call.1} parent=5 // pred_fallthru
        _
      %p1049 = scmp.le.s32.totalorder 2, %s15
      // Predicated region
      $region49: #{tpu_custom_call.1} parent=5 // pred_check
        %p1050 = pneg %p1049
      $region50: #{tpu_custom_call.1} parent=5 // pred_check_branch
        %1052 = sbr.rel (%p1050) target = $region52
      $region51: #{tpu_custom_call.1} parent=5 // pred_region
        %s1053 = ssub.s32 %s15, 2
        // Predicated region
        $region53: #{tpu_custom_call.1} parent=51 // pred_check
          %p1054 = pneg %p175
        $region54: #{tpu_custom_call.1} parent=51 // pred_check_branch
          %1056 = sbr.rel (%p1054) target = $region56
        $region55: #{tpu_custom_call.1} parent=51 // pred_region
          %s1057 = sand.u32 %s160, 1
          %s1058 = scalar_lea.sflag [#allocation4], %s1057
          %s1059 = sand.u32 %s160, 1
          %s1060 = smul.addr %s1059, 16
          %s1061 = scalar_lea.vmem [#allocation3], %s1060
          %1063 = dma.done %s1058, 256
        $region56: #{tpu_custom_call.1} parent=51 // pred_fallthru
          _
      $region52: #{tpu_custom_call.1} parent=5 // pred_fallthru
        _
    $region6: #{tpu_custom_call.1} parent=1 // loop_footer
      %s19 = sadd.s32 1, %s15
    $region7: #{tpu_custom_call.1} parent=1 // loop_footer_branch
      %14 = sbr.rel target = $region3
    $region8: #{tpu_custom_call.1} parent=1 // loop_exit
      _
    %1064 = vsyncpa [#allocation4], 1
    %s1065 = scalar_lea.sflag [#allocation4], 1
    %1066 = vsyncpa %s1065, 1

</llo_original>
